<compile_context>
chip_gen: v7x
topology: tpu7x:2x2x1
jax: 0.10.0
libtpu: 0.0.40
codegen_flags: <defaults>
</compile_context>

<pallas_src>
import functools

import jax
import jax.numpy as jnp
from jax.experimental import pallas as pl
from jax.experimental.pallas import tpu as pltpu


LANE = 128
SUBLANE = 8


def _round_up(n, m):
    return ((n + m - 1) // m) * m


# ----------------------------- Pallas kernel --------------------------------

def _fused_linear_kernel(x_ref, w_ref, b_ref, o_ref):
    # x: (tm, Din_p) bf16   w: (Din_p, Dout_p) bf16 (LoRA already folded in)
    # b: (1, Dout_p)  f32   o: (tm, Dout_p)     f32
    acc = jnp.dot(x_ref[...], w_ref[...], preferred_element_type=jnp.float32)
    o_ref[...] = (acc + b_ref[...]).astype(o_ref.dtype)


# --------------------- parameter folding / packing (once) -------------------

def _fold(w, b, lora_down=None, lora_up=None, scale=1.0):
    """Return (W_eff^T, bias) in f32: W_eff^T = W.T + scale * A.T @ B.T."""
    wt = jnp.transpose(w).astype(jnp.float32)                     # (Din, Dout)
    if lora_down is not None and scale != 0.0:
        delta = jnp.dot(jnp.transpose(lora_down).astype(jnp.float32),   # (Din, r)
                        jnp.transpose(lora_up).astype(jnp.float32))     # (r, Dout)
        wt = wt + scale * delta
    return wt, b.astype(jnp.float32)


def _pack(wt, b, weight_dtype=jnp.bfloat16):
    """Pad (Din, Dout) weight / bias to 128-lane multiples, cast weight."""
    din, dout = wt.shape
    din_p, dout_p = _round_up(din, LANE), _round_up(dout, LANE)
    wt_p = jnp.pad(wt, ((0, din_p - din), (0, dout_p - dout))).astype(weight_dtype)
    b_p = jnp.pad(b, (0, dout_p - dout)).reshape(1, dout_p).astype(jnp.float32)
    return {"w": wt_p, "b": b_p, "din": din, "dout": dout}


def prepare_fused_params(p, *, lora_scale=1.0, weight_dtype=jnp.bfloat16):
    """One-time: fold LoRA, transpose, fuse qkv, pad, cast."""
    qkv_wt, qkv_b = [], []
    for name in ("q", "k", "v"):
        wt, b = _fold(p[f"{name}_w"], p[f"{name}_b"],
                      p[f"{name}_lora_down"], p[f"{name}_lora_up"], lora_scale)
        qkv_wt.append(wt)
        qkv_b.append(b)
    fused = {
        "qkv": _pack(jnp.concatenate(qkv_wt, axis=1),
                     jnp.concatenate(qkv_b), weight_dtype),
        "out": _pack(*_fold(p["out_w"], p["out_b"],
                            p["out_lora_down"], p["out_lora_up"], lora_scale),
                     weight_dtype),
        "fc1": _pack(*_fold(p["fc1_w"], p["fc1_b"]), weight_dtype),
        "fc2": _pack(*_fold(p["fc2_w"], p["fc2_b"]), weight_dtype),
    }
    for k in ("tok_emb", "pos_emb", "ln1_g", "ln1_b",
              "ln2_g", "ln2_b", "lnf_g", "lnf_b"):
        fused[k] = p[k]
    return fused


# ------------------------------ kernel wrapper -------------------------------

def fused_linear(x, packed, *, tm=256):
    """y = x @ W_eff + b  (LoRA pre-folded into W_eff).  x: (M, Din) f32."""
    M, din = x.shape
    assert din == packed["din"], (din, packed["din"])
    w, b = packed["w"], packed["b"]
    din_p, dout_p = w.shape

    xp = x.astype(w.dtype)                       # bf16 at the call boundary
    if din_p != din:
        xp = jnp.pad(xp, ((0, 0), (0, din_p - din)))

    if M <= tm:
        tm_eff = M                               # whole-M block (full-dim rule)
    else:
        assert tm % SUBLANE == 0
        tm_eff = tm
    grid = (pl.cdiv(M, tm_eff),)

    out = pl.pallas_call(
        _fused_linear_kernel,
        out_shape=jax.ShapeDtypeStruct((M, dout_p), jnp.float32),
        grid_spec=pltpu.PrefetchScalarGridSpec(
            num_scalar_prefetch=0,
            grid=grid,
            in_specs=[
                pl.BlockSpec((tm_eff, din_p), lambda i: (i, 0)),
                # constant index maps: weight/bias stay resident in VMEM
                pl.BlockSpec((din_p, dout_p), lambda i: (0, 0)),
                pl.BlockSpec((1, dout_p), lambda i: (0, 0)),
            ],
            out_specs=pl.BlockSpec((tm_eff, dout_p), lambda i: (i, 0)),
        ),
        # NOTE: for real CLIP sizes on v7x (64 MiB VMEM), set
        # vmem_limit_bytes explicitly if fc1 (768x3072) weights stay resident.
        compiler_params=pltpu.CompilerParams(
            dimension_semantics=("parallel",)),
    )(xp, w, b)

    if dout_p != packed["dout"]:
        out = out[:, :packed["dout"]]
    return out


# ------------------------- minimal CLIP text encoder -------------------------

def layer_norm(x, g, b, eps=1e-5):
    mu = jnp.mean(x, axis=-1, keepdims=True)
    var = jnp.mean(jnp.square(x - mu), axis=-1, keepdims=True)
    return (x - mu) * jax.lax.rsqrt(var + eps) * g + b


def quick_gelu(x):
    return x * jax.nn.sigmoid(1.702 * x)


def init_params(key, vocab=64, seq=8, hidden=32, mlp_dim=64, rank=4):
    ks = jax.random.split(key, 20)
    n = lambda k, shape, s=0.02: (s * jax.random.normal(k, shape)).astype(jnp.float32)
    p = {
        "tok_emb": n(ks[0], (vocab, hidden)),
        "pos_emb": n(ks[1], (seq, hidden)),
        "ln1_g": jnp.ones((hidden,), jnp.float32),
        "ln1_b": jnp.zeros((hidden,), jnp.float32),
        "ln2_g": jnp.ones((hidden,), jnp.float32),
        "ln2_b": jnp.zeros((hidden,), jnp.float32),
        "lnf_g": jnp.ones((hidden,), jnp.float32),
        "lnf_b": jnp.zeros((hidden,), jnp.float32),
        "fc1_w": n(ks[2], (mlp_dim, hidden)),
        "fc1_b": jnp.zeros((mlp_dim,), jnp.float32),
        "fc2_w": n(ks[3], (hidden, mlp_dim)),
        "fc2_b": jnp.zeros((hidden,), jnp.float32),
    }
    # LoRA-patched attention projections (q/k/v/out), rank-4.
    ki = 4
    for name in ("q", "k", "v", "out"):
        p[f"{name}_w"] = n(ks[ki], (hidden, hidden)); ki += 1
        p[f"{name}_b"] = jnp.zeros((hidden,), jnp.float32)
        p[f"{name}_lora_down"] = n(ks[ki], (rank, hidden), s=1.0 / rank); ki += 1
        # diffusers zero-inits the up weight; small nonzero so LoRA contributes.
        p[f"{name}_lora_up"] = n(ks[ki], (hidden, rank)); ki += 1
    return p


def clip_lora_forward(fused, input_ids, *, num_heads=4):
    B, S = input_ids.shape
    H = fused["tok_emb"].shape[1]
    hd = H // num_heads

    x = fused["tok_emb"][input_ids] + fused["pos_emb"][None, :S]   # (B, S, H)

    # ---- self-attention block (fused qkv + out projections via Pallas) ----
    residual = x
    h = layer_norm(x, fused["ln1_g"], fused["ln1_b"]).reshape(B * S, H)

    qkv = fused_linear(h, fused["qkv"])                            # (B*S, 3H)
    q, k, v = jnp.split(qkv, 3, axis=-1)

    def split_heads(t):
        return t.reshape(B, S, num_heads, hd).transpose(0, 2, 1, 3)

    q, k, v = split_heads(q), split_heads(k), split_heads(v)
    scores = jnp.einsum("bhqd,bhkd->bhqk", q * (hd ** -0.5), k)
    causal = jnp.tril(jnp.ones((S, S), bool))
    scores = jnp.where(causal[None, None], scores, -jnp.inf)
    attn = jax.nn.softmax(scores, axis=-1)
    ctx = jnp.einsum("bhqk,bhkd->bhqd", attn, v)
    ctx = ctx.transpose(0, 2, 1, 3).reshape(B * S, H)

    out = fused_linear(ctx, fused["out"])
    x = residual + out.reshape(B, S, H)

    # ---- MLP block (plain fused linears, no LoRA work) ----
    residual = x
    h = layer_norm(x, fused["ln2_g"], fused["ln2_b"]).reshape(B * S, H)
    h = fused_linear(h, fused["fc1"])
    h = quick_gelu(h)
    h = fused_linear(h, fused["fc2"])
    x = residual + h.reshape(B, S, H)

    return layer_norm(x, fused["lnf_g"], fused["lnf_b"])


# --------------------------------- main --------------------------------------

if __name__ == "__main__":
    key = jax.random.PRNGKey(0)
    pkey, dkey = jax.random.split(key)

    B, S, H, RANK, VOCAB = 2, 8, 32, 4, 64
    params = init_params(pkey, vocab=VOCAB, seq=S, hidden=H, mlp_dim=2 * H, rank=RANK)
    fused = prepare_fused_params(params, lora_scale=1.0, weight_dtype=jnp.bfloat16)
    input_ids = jax.random.randint(dkey, (B, S), 0, VOCAB)

    out = clip_lora_forward(fused, input_ids, num_heads=4)
    out = jax.block_until_ready(out)
    assert out.shape == (B, S, H) and out.dtype == jnp.float32

    hp = jax.lax.Precision.HIGHEST

    def ref_lora_linear(x, w, b, down, up, scale=1.0):
        return (jnp.dot(x, w.T, precision=hp) + b
                + scale * jnp.dot(jnp.dot(x, down.T, precision=hp),
                                  up.T, precision=hp))

    # Check 1: fused (LoRA-folded, bf16) Pallas linear vs unfused f32 reference.
    x2 = jax.random.normal(jax.random.PRNGKey(3), (B * S, H), jnp.float32)
    packed_q = _pack(*_fold(params["q_w"], params["q_b"],
                            params["q_lora_down"], params["q_lora_up"], 1.0))
    y_pallas = fused_linear(x2, packed_q)
    y_ref = ref_lora_linear(x2, params["q_w"], params["q_b"],
                            params["q_lora_down"], params["q_lora_up"], 1.0)
    assert jnp.allclose(y_pallas, y_ref, atol=2e-2, rtol=2e-2)

    # Check 2: multi-tile grid path (M=512, tm=128 -> 4 parallel grid steps).
    x3 = jax.random.normal(jax.random.PRNGKey(4), (512, H), jnp.float32)
    y3 = jax.block_until_ready(fused_linear(x3, packed_q, tm=128))
    y3_ref = ref_lora_linear(x3, params["q_w"], params["q_b"],
                             params["q_lora_down"], params["q_lora_up"], 1.0)
    assert jnp.allclose(y3, y3_ref, atol=2e-2, rtol=2e-2)

    # TODO(synk): the real wrapper builds `text_encoder` from a registry config
    # (full pretrained CLIP); here a minimal 1-layer CLIP-style encoder stands in.
    print("KERNEL_OK")
</pallas_src>

<mosaic_0001>
module attributes {stable_mosaic.version = 11 : i64} {
  func.func @_fused_linear_kernel(%arg0: i32, %arg1: memref<16x128xbf16, #tpu.memory_space<vmem>>, %arg2: memref<128x128xbf16, #tpu.memory_space<vmem>>, %arg3: memref<1x128xf32, #tpu.memory_space<vmem>>, %arg4: memref<16x128xf32, #tpu.memory_space<vmem>>) attributes {dimension_semantics = [#tpu.dimension_semantics<parallel>], iteration_bounds = array<i64: 1>, scalar_prefetch = 0 : i64, scratch_operands = 0 : i64, tpu.core_type = #tpu.core_type<tc>, window_params = [{transform_indices = @transform_0, window_bounds = array<i64: 16, 128>}, {pipeline_mode = #tpu.pipeline_mode<synchronous>, transform_indices = @transform_1, window_bounds = array<i64: 128, 128>}, {pipeline_mode = #tpu.pipeline_mode<synchronous>, transform_indices = @transform_2, window_bounds = array<i64: 1, 128>}, {transform_indices = @transform_3, window_bounds = array<i64: 16, 128>}]} {
    %c0 = arith.constant 0 : index
    %c0_0 = arith.constant 0 : index
    %0 = vector.load %arg1[%c0, %c0_0] : memref<16x128xbf16, #tpu.memory_space<vmem>>, vector<16x128xbf16>
    %c0_1 = arith.constant 0 : index
    %c0_2 = arith.constant 0 : index
    %1 = vector.load %arg2[%c0_1, %c0_2] : memref<128x128xbf16, #tpu.memory_space<vmem>>, vector<128x128xbf16>
    %cst = arith.constant dense<0.000000e+00> : vector<16x128xf32>
    %2 = tpu.matmul %0, %1, %cst {dimension_numbers = #tpu.dot_dimension_numbers<[1], [0], [0], [1], [0, 0, 1, 1], [], []>} : vector<16x128xbf16>, vector<128x128xbf16>, vector<16x128xf32> -> vector<16x128xf32>
    %c0_3 = arith.constant 0 : index
    %c0_4 = arith.constant 0 : index
    %3 = vector.load %arg3[%c0_3, %c0_4] : memref<1x128xf32, #tpu.memory_space<vmem>>, vector<1x128xf32>
    %4 = vector.broadcast %3 : vector<1x128xf32> to vector<16x128xf32>
    %5 = arith.addf %2, %4 : vector<16x128xf32>
    %c0_5 = arith.constant 0 : index
    %c0_6 = arith.constant 0 : index
    %6 = vector.load %arg4[%c0_5, %c0_6] : memref<16x128xf32, #tpu.memory_space<vmem>>, vector<16x128xf32>
    tpu.vector_store %arg4[%c0_5, %c0_6], %5 {strides = array<i32>} : memref<16x128xf32, #tpu.memory_space<vmem>>, vector<16x128xf32>,
    return
  }
  func.func @transform_0(%arg0: i32) -> (i32, i32) {
    %c0_i32 = arith.constant 0 : i32
    %c0_i32_0 = arith.constant 0 : i32
    return %arg0, %c0_i32 : i32, i32
  }
  func.func @transform_1(%arg0: i32) -> (i32, i32) {
    %c0_i32 = arith.constant 0 : i32
    %c0_i32_0 = arith.constant 0 : i32
    %c0_i32_1 = arith.constant 0 : i32
    return %c0_i32, %c0_i32_0 : i32, i32
  }
  func.func @transform_2(%arg0: i32) -> (i32, i32) {
    %c0_i32 = arith.constant 0 : i32
    %c0_i32_0 = arith.constant 0 : i32
    %c0_i32_1 = arith.constant 0 : i32
    return %c0_i32, %c0_i32_0 : i32, i32
  }
  func.func @transform_3(%arg0: i32) -> (i32, i32) {
    %c0_i32 = arith.constant 0 : i32
    %c0_i32_0 = arith.constant 0 : i32
    return %arg0, %c0_i32 : i32, i32
  }
}

</mosaic_0001>

<llo_original>
// kernel: tpu_custom_call.1
$region0: #{tpu_custom_call.1}
  #allocation0 [shape = 'u32[]', space=smem, size = 0x4, offset = 0x4, fixed_abs, tag = 'smem constant byte address 0x4 - core index']
  #allocation1 [shape = 'u32[144,128]{1,0:T(1,128)}', space=vmem, size = 0x12000, scoped, tag = 'internal scratch']
  %s0 = inlined_call_operand.hbm [shape: bf16[16,128], index: 0, kind: input, shape index: {}]
  %s1 = inlined_call_operand.hbm [shape: bf16[128,128], index: 1, kind: input, shape index: {}]
  %s2 = inlined_call_operand.vmem [shape: f32[1,128], index: 2, kind: input, shape index: {}]
  %s3 = inlined_call_operand.hbm [shape: f32[16,128], index: 3, kind: output, shape index: {}]
  %s4 = sld [smem:[#allocation0]]
  $region30: #{tpu_custom_call.1} parent=0
    _
  %s6 = ssub.s32 1, %s4
  %s7 = scalar_select 0, %s6, %s4
  $region1: #{tpu_custom_call.1} parent=0
    #allocation2 [shape = 'u8[4096]{0}', space=vmem, size = 0x1000, scoped, tag = 'input window, operand 0, single buffered']
    #allocation3 [shape = 's32[1]{0}', space=sflag, size = 0x4, scoped, tag = 'scoped memory for tpu_custom_call.1']
    #allocation4 [shape = 's32[1]{0}', space=sflag, size = 0x4, scoped, tag = 'scoped memory for tpu_custom_call.1']
    #allocation5 [shape = 'u8[32768]{0}', space=vmem, size = 0x8000, scoped, tag = 'input window, operand 1, single buffered']
    #allocation6 [shape = 's32[1]{0}', space=sflag, size = 0x4, scoped, tag = 'scoped memory for tpu_custom_call.1']
    #allocation7 [shape = 'u8[8192]{0}', space=vmem, size = 0x2000, scoped, tag = 'output window, operand 0, single buffered']
    %8 = vsyncpa [#allocation3], 0
    %9 = vsyncpa [#allocation6], 0
    %10 = vsyncpa [#allocation4], 0
    // Predicated region
    $region2: #{tpu_custom_call.1} parent=1 // pred_check
      _
    $region3: #{tpu_custom_call.1} parent=1 // pred_check_branch
      %12 = sbr.rel (0) target = $region5
    $region4: #{tpu_custom_call.1} parent=1 // pred_region
      %s14 = ssub.s32 128, 128
      %15 = vsyncadd [#allocation3], %s14
      %s16 = sshll.u32 [#allocation2], 4
      %s17 = int_to_ptr.vmem [resolvable:$true] %s16
      %22 = dma.hbm_to_vmem [thread:$0]  %s0, 128, %s17, [#allocation3], 64, 64, 4
    $region5: #{tpu_custom_call.1} parent=1 // pred_fallthru
      _
    // Predicated region
    $region6: #{tpu_custom_call.1} parent=1 // pred_check
      _
    $region7: #{tpu_custom_call.1} parent=1 // pred_check_branch
      %24 = sbr.rel (0) target = $region9
    $region8: #{tpu_custom_call.1} parent=1 // pred_region
      %s26 = ssub.s32 1024, 1024
      %27 = vsyncadd [#allocation6], %s26
      %s28 = sshll.u32 [#allocation5], 4
      %s29 = int_to_ptr.vmem [resolvable:$true] %s28
      %34 = dma.hbm_to_vmem [thread:$0]  %s1, 1024, %s29, [#allocation6], 64, 64, 4
    $region9: #{tpu_custom_call.1} parent=1 // pred_fallthru
      _
    // Predicated region
    $region10: #{tpu_custom_call.1} parent=1 // pred_check
      _
    $region11: #{tpu_custom_call.1} parent=1 // pred_check_branch
      %36 = sbr.rel (0) target = $region13
    $region12: #{tpu_custom_call.1} parent=1 // pred_region
      _
    $region13: #{tpu_custom_call.1} parent=1 // pred_fallthru
      _
    // Predicated region
    $region14: #{tpu_custom_call.1} parent=1 // pred_check
      _
    $region15: #{tpu_custom_call.1} parent=1 // pred_check_branch
      %38 = sbr.rel (0) target = $region17
    $region16: #{tpu_custom_call.1} parent=1 // pred_region
      %39 = dma.done [#allocation3], 128
    $region17: #{tpu_custom_call.1} parent=1 // pred_fallthru
      _
    // Predicated region
    $region18: #{tpu_custom_call.1} parent=1 // pred_check
      _
    $region19: #{tpu_custom_call.1} parent=1 // pred_check_branch
      %41 = sbr.rel (0) target = $region21
    $region20: #{tpu_custom_call.1} parent=1 // pred_region
      %42 = dma.done [#allocation6], 1024
    $region21: #{tpu_custom_call.1} parent=1 // pred_fallthru
      _
    %v44 = vld [vmem:[#allocation2] sm:$0xf]
    %v45 = vld [vmem:[#allocation2 + $0x4] sm:$0xf]
    %v46 = vld [vmem:[#allocation5] sm:$0xf]
    %v47 = vld [vmem:[#allocation5 + $0x4] sm:$0xf]
    %v48 = vld [vmem:[#allocation5 + $0x8] sm:$0xf]
    %v49 = vld [vmem:[#allocation5 + $0xc] sm:$0xf]
    %v50 = vld [vmem:[#allocation5 + $0x10] sm:$0xf]
    %v51 = vld [vmem:[#allocation5 + $0x14] sm:$0xf]
    %v52 = vld [vmem:[#allocation5 + $0x18] sm:$0xf]
    %v53 = vld [vmem:[#allocation5 + $0x1c] sm:$0xf]
    %v54 = vld [vmem:[#allocation5 + $0x20] sm:$0xf]
    %v55 = vld [vmem:[#allocation5 + $0x24] sm:$0xf]
    %v56 = vld [vmem:[#allocation5 + $0x28] sm:$0xf]
    %v57 = vld [vmem:[#allocation5 + $0x2c] sm:$0xf]
    %v58 = vld [vmem:[#allocation5 + $0x30] sm:$0xf]
    %v59 = vld [vmem:[#allocation5 + $0x34] sm:$0xf]
    %v60 = vld [vmem:[#allocation5 + $0x38] sm:$0xf]
    %v61 = vld [vmem:[#allocation5 + $0x3c] sm:$0xf]
    %v62 = vld [vmem:[%s2] sm:$0x1]
    %v64 = vlaneseq
    %v65 = vshrl.u32 %v64, 7
    %v66 = vsub.s32 0, %v65
    %v67 = vrot.slane %v62, %v66
    %v71 = vunpack.c.l.b16 %v44
    %v72 = vunpack.c.l.b16 %v45
    %v73 = vpack.c.b16 %v72, %v71
    %v91 = vunpack.c.l.b16 %v46
    %v92 = vunpack.c.l.b16 %v47
    %v93 = vunpack.c.l.b16 %v48
    %v94 = vunpack.c.l.b16 %v49
    %v95 = vunpack.c.l.b16 %v50
    %v96 = vunpack.c.l.b16 %v51
    %v97 = vunpack.c.l.b16 %v52
    %v98 = vunpack.c.l.b16 %v53
    %v99 = vunpack.c.l.b16 %v54
    %v100 = vunpack.c.l.b16 %v55
    %v101 = vunpack.c.l.b16 %v56
    %v102 = vunpack.c.l.b16 %v57
    %v103 = vunpack.c.l.b16 %v58
    %v104 = vunpack.c.l.b16 %v59
    %v105 = vunpack.c.l.b16 %v60
    %v106 = vunpack.c.l.b16 %v61
    %v107 = vpack.c.b16 %v92, %v91
    %v108 = vpack.c.b16 %v94, %v93
    %v109 = vpack.c.b16 %v96, %v95
    %v110 = vpack.c.b16 %v98, %v97
    %v111 = vpack.c.b16 %v100, %v99
    %v112 = vpack.c.b16 %v102, %v101
    %v113 = vpack.c.b16 %v104, %v103
    %v114 = vpack.c.b16 %v106, %v105
    %123 = vmatprep.subr.bf16.mxu0 0
    %124 = vmatpush1.bf16.msra.mxu0 %v107
    %125 = vmatprep.subr.bf16.mxu0 0
    %126 = vmatpush1.bf16.msra.mxu0 %v108
    %127 = vmatprep.subr.bf16.mxu0 0
    %128 = vmatpush1.bf16.msra.mxu0 %v109
    %129 = vmatprep.subr.bf16.mxu0 0
    %130 = vmatpush1.bf16.msra.mxu0 %v110
    %131 = vmatprep.subr.bf16.mxu0 0
    %132 = vmatpush1.bf16.msra.mxu0 %v111
    %133 = vmatprep.subr.bf16.mxu0 0
    %134 = vmatpush1.bf16.msra.mxu0 %v112
    %135 = vmatprep.subr.bf16.mxu0 0
    %136 = vmatpush1.bf16.msra.mxu0 %v113
    %137 = vmatprep.subr.bf16.mxu0 0
    %138 = vmatpush1.bf16.msra.mxu0 %v114
    %139 = vmatprep.subr.bf16.mxu0 0
    %140 = vmatpush1.bf16.msra.mxu0 0
    %141 = vmatprep.subr.bf16.mxu0 0
    %142 = vmatpush1.bf16.msra.mxu0 0
    %143 = vmatprep.subr.bf16.mxu0 0
    %144 = vmatpush1.bf16.msra.mxu0 0
    %145 = vmatprep.subr.bf16.mxu0 0
    %146 = vmatpush1.bf16.msra.mxu0 0
    %147 = vmatprep.subr.bf16.mxu0 0
    %148 = vmatpush1.bf16.msra.mxu0 0
    %149 = vmatprep.subr.bf16.mxu0 0
    %150 = vmatpush1.bf16.msra.mxu0 0
    %151 = vmatprep.subr.bf16.mxu0 0
    %152 = vmatpush1.bf16.msra.mxu0 0
    %153 = vmatprep.subr.bf16.mxu0 0
    %154 = vmatpush1.bf16.msra.mxu0 0
    %155 = vmatprep.mubr.bf16.mxu0 0
    %156 = vmatmul.mubr.bf16.gmra.mrb[0].mxu0 %v73
    %v157 = vpop.f32.mrb[0].mxu0
    %v158 = vadd.f32 %v67, %v157
    %v159 = vpop.f32.mrb[0].mxu0
    %v160 = vpop.f32.mrb[0].mxu0
    %v161 = vadd.f32 %v67, %v160
    %v162 = vpop.f32.mrb[0].mxu0
    %163 = vdwg.mxu0
    %164 = vst [vmem:[#allocation7] sm:$0xff] %v158
    %165 = vst [vmem:[#allocation7 + $0x8] sm:$0xff] %v161
    // Predicated region
    $region22: #{tpu_custom_call.1} parent=1 // pred_check
      _
    $region23: #{tpu_custom_call.1} parent=1 // pred_check_branch
      %167 = sbr.rel (0) target = $region25
    $region24: #{tpu_custom_call.1} parent=1 // pred_region
      %s169 = ssub.s32 256, 256
      %170 = vsyncadd [#allocation4], %s169
      %s171 = sshll.u32 [#allocation7], 4
      %s172 = int_to_ptr.vmem [resolvable:$true] %s171
      %177 = dma.vmem_to_hbm [thread:$0]  %s172, 256, %s3, [#allocation4], 128, 128, 8
    $region25: #{tpu_custom_call.1} parent=1 // pred_fallthru
      _
    // Predicated region
    $region26: #{tpu_custom_call.1} parent=1 // pred_check
      _
    $region27: #{tpu_custom_call.1} parent=1 // pred_check_branch
      %179 = sbr.rel (0) target = $region29
    $region28: #{tpu_custom_call.1} parent=1 // pred_region
      %180 = dma.done [#allocation4], 256
    $region29: #{tpu_custom_call.1} parent=1 // pred_fallthru
      _
    %181 = vsyncpa [#allocation3], 1
    %182 = vsyncpa [#allocation6], 1
    %183 = vsyncpa [#allocation4], 1

</llo_original>
